<compile_context>
chip_gen: v7x
topology: tpu7x:2x2x1
jax: 0.10.0
libtpu: 0.0.40
codegen_flags: <defaults>
</compile_context>

<pallas_src>
import functools

import jax
import jax.numpy as jnp
from jax import lax
from jax.experimental import pallas as pl
from jax.experimental.pallas import tpu as pltpu


def _round_up(x, m):
    return ((x + m - 1) // m) * m


def _emb_layernorm_kernel(ids_ref, tids_ref, hi_ref, lo_ref, g_ref, b_ref,
                          o_ref, *, eps, word_vocab):
    """One (TM, H) token tile: one-hot MXU gather of both tables + LayerNorm."""
    tm = o_ref.shape[0]
    k_pad = hi_ref.shape[0]

    ids = ids_ref[...]                        # (TM, 1) int32 word ids
    tids = tids_ref[...] + word_vocab         # (TM, 1) int32 shifted type ids

    # Combined one-hot: word row OR (offset) type row.  The two index ranges are
    # disjoint ([0,V) vs [V,V+T)), so the OR is exact.  0/1 values are exactly
    # representable in bf16.  Word ids >= V would alias into the type region;
    # inputs are assumed pre-validated (PyTorch nn.Embedding would fault too).
    col = lax.broadcasted_iota(jnp.int32, (tm, k_pad), 1)
    one_hot = ((col == ids) | (col == tids)).astype(jnp.bfloat16)   # (TM, K_pad)

    # gather(word) + gather(type) + add as two bf16 MXU passes (hi/lo split of
    # the f32 table), accumulated in f32 -> ~f32-accurate, ~3x fewer MXU passes
    # than a HIGHEST-precision f32 matmul.
    x = (jnp.dot(one_hot, hi_ref[...], preferred_element_type=jnp.float32)
         + jnp.dot(one_hot, lo_ref[...], preferred_element_type=jnp.float32))

    # One-pass LayerNorm statistics over the hidden axis (single reduction sweep).
    inv_h = 1.0 / x.shape[-1]
    s1 = jnp.sum(x, axis=-1, keepdims=True)
    s2 = jnp.sum(x * x, axis=-1, keepdims=True)
    mean = s1 * inv_h
    var = jnp.maximum(s2 * inv_h - mean * mean, 0.0)
    y = (x - mean) * lax.rsqrt(var + eps)

    gamma = g_ref[...]                        # (1, H) f32
    beta = b_ref[...]                         # (1, H) f32
    o_ref[...] = (y * gamma + beta).astype(o_ref.dtype)
    # TODO(synk): dropout omitted — module-level nn.Dropout is identity at inference.


def prepare_embedding_tables(word_emb, type_emb):
    """Stack word + type tables into one zero-padded table, split hi/lo in bf16.

    In a real model, call this ONCE at load time and pass the result to every
    forward call (it only depends on the weights).
    """
    V, H = word_emb.shape
    T = type_emb.shape[0]
    k_pad = max(128, _round_up(V + T, 128))
    table = jnp.zeros((k_pad, H), dtype=jnp.float32)
    table = table.at[:V].set(word_emb.astype(jnp.float32))
    table = table.at[V:V + T].set(type_emb.astype(jnp.float32))
    table_hi = table.astype(jnp.bfloat16)
    table_lo = (table - table_hi.astype(jnp.float32)).astype(jnp.bfloat16)
    return table_hi, table_lo


def positionless_embeddings(input_ids, token_type_ids, word_emb, type_emb,
                            ln_weight, ln_bias, *, eps=1e-12, tile_m=512,
                            out_dtype=None, tables=None):
    B, S = input_ids.shape
    V, H = word_emb.shape
    T = type_emb.shape[0]
    N = B * S
    out_dtype = out_dtype if out_dtype is not None else word_emb.dtype
    # NOTE: passing out_dtype=jnp.bfloat16 halves output writeback (the dominant
    # HBM traffic) if the downstream consumer accepts bf16 activations.

    if tables is None:
        tables = prepare_embedding_tables(word_emb, type_emb)
    table_hi, table_lo = tables
    k_pad = table_hi.shape[0]

    # Token tile: multiple of 8 sublanes; no padding of the token axis — the
    # grid uses cdiv and Pallas masks the ragged final block, so there is no
    # post-kernel out[:N] copy.
    tm = min(tile_m, _round_up(N, 8))
    grid = (pl.cdiv(N, tm),)

    ids2d = input_ids.reshape(N, 1).astype(jnp.int32)
    tids2d = token_type_ids.reshape(N, 1).astype(jnp.int32)

    # TODO(synk): for realistically large vocabularies ((V+T)*H table no longer
    # comfortably VMEM-resident — reached at half the size on v7x's 64 MiB) switch
    # to a memory_space=pl.ANY table + scalar-prefetch DMA row gathers instead of
    # the one-hot matmul (whose FLOPs grow as N*(V+T)*H).
    cost = pl.CostEstimate(
        flops=2 * 2 * N * k_pad * H + 10 * N * H,   # two bf16 MXU passes + LN
        transcendentals=N,                          # one rsqrt per token row
        bytes_accessed=(N * H * jnp.dtype(out_dtype).itemsize   # output writeback
                        + 2 * k_pad * H * 2                     # hi+lo table, DMA'd once
                        + 2 * N * 4),                           # ids + type ids
    )

    out = pl.pallas_call(
        functools.partial(_emb_layernorm_kernel, eps=eps, word_vocab=V),
        out_shape=jax.ShapeDtypeStruct((N, H), out_dtype),
        grid=grid,
        in_specs=[
            pl.BlockSpec((tm, 1), lambda i: (i, 0)),       # word ids   (TM, 1)
            pl.BlockSpec((tm, 1), lambda i: (i, 0)),       # type ids   (TM, 1)
            pl.BlockSpec((k_pad, H), lambda i: (0, 0)),    # stacked table, hi half
            pl.BlockSpec((k_pad, H), lambda i: (0, 0)),    # stacked table, lo half
            pl.BlockSpec((1, H), lambda i: (0, 0)),        # LN gamma
            pl.BlockSpec((1, H), lambda i: (0, 0)),        # LN beta
        ],
        out_specs=pl.BlockSpec((tm, H), lambda i: (i, 0)),
        compiler_params=pltpu.CompilerParams(
            dimension_semantics=("parallel",),
            vmem_limit_bytes=32 * 1024 * 1024),
        cost_estimate=cost,
    )(ids2d, tids2d, table_hi, table_lo,
      ln_weight.reshape(1, H).astype(jnp.float32),
      ln_bias.reshape(1, H).astype(jnp.float32))

    return out.reshape(B, S, H)


def _reference(input_ids, token_type_ids, word_emb, type_emb, gamma, beta, eps=1e-12):
    x = word_emb[input_ids] + type_emb[token_type_ids]
    x = x.astype(jnp.float32)
    mean = jnp.mean(x, axis=-1, keepdims=True)
    var = jnp.mean(jnp.square(x - mean), axis=-1, keepdims=True)
    return (x - mean) * lax.rsqrt(var + eps) * gamma + beta


if __name__ == "__main__":
    # Small config consistent with the module's __init__:
    vocab_size = 16        # number of expression bins ("words")
    type_vocab_size = 64   # number of genes ("token types")
    hidden_size = 128
    pad_token_id = 0
    eps = 1e-12
    B, S = 2, 8

    key = jax.random.PRNGKey(0)
    k_w, k_t, k_ids, k_tids = jax.random.split(key, 4)

    # Deterministic parameter init (nn.Embedding ~ N(0,1), LN weight=1 / bias=0).
    word_emb = jax.random.normal(k_w, (vocab_size, hidden_size), dtype=jnp.float32)
    word_emb = word_emb.at[pad_token_id].set(0.0)   # padding_idx row is zeroed
    type_emb = jax.random.normal(k_t, (type_vocab_size, hidden_size), dtype=jnp.float32)
    ln_weight = jnp.ones((hidden_size,), dtype=jnp.float32)
    ln_bias = jnp.zeros((hidden_size,), dtype=jnp.float32)

    input_ids = jax.random.randint(k_ids, (B, S), 0, vocab_size, dtype=jnp.int32)
    token_type_ids = jax.random.randint(k_tids, (B, S), 0, type_vocab_size, dtype=jnp.int32)

    # Tables built once (would be cached alongside the weights in a real model).
    tables = prepare_embedding_tables(word_emb, type_emb)

    out = positionless_embeddings(input_ids, token_type_ids, word_emb, type_emb,
                                  ln_weight, ln_bias, eps=eps, tables=tables)
    out = jax.block_until_ready(out)

    ref = _reference(input_ids, token_type_ids, word_emb, type_emb, ln_weight, ln_bias, eps)
    assert out.shape == (B, S, hidden_size)
    # hi/lo bf16-split table is ~f32-accurate (rel err ~4e-6 per gathered entry).
    assert jnp.allclose(out, ref, atol=1e-4, rtol=1e-4), "mismatch vs reference"

    print("KERNEL_OK")
</pallas_src>

<mosaic_0001>
module attributes {stable_mosaic.version = 11 : i64} {
  func.func @_emb_layernorm_kernel(%arg0: i32, %arg1: memref<16x1xi32, #tpu.memory_space<vmem>>, %arg2: memref<16x1xi32, #tpu.memory_space<vmem>>, %arg3: memref<128x128xbf16, #tpu.memory_space<vmem>>, %arg4: memref<128x128xbf16, #tpu.memory_space<vmem>>, %arg5: memref<1x128xf32, #tpu.memory_space<vmem>>, %arg6: memref<1x128xf32, #tpu.memory_space<vmem>>, %arg7: memref<16x128xf32, #tpu.memory_space<vmem>>) attributes {dimension_semantics = [#tpu.dimension_semantics<parallel>], iteration_bounds = array<i64: 1>, scalar_prefetch = 0 : i64, scratch_operands = 0 : i64, tpu.core_type = #tpu.core_type<tc>, window_params = [{transform_indices = @transform_0, window_bounds = array<i64: 16, 1>}, {transform_indices = @transform_1, window_bounds = array<i64: 16, 1>}, {pipeline_mode = #tpu.pipeline_mode<synchronous>, transform_indices = @transform_2, window_bounds = array<i64: 128, 128>}, {pipeline_mode = #tpu.pipeline_mode<synchronous>, transform_indices = @transform_3, window_bounds = array<i64: 128, 128>}, {pipeline_mode = #tpu.pipeline_mode<synchronous>, transform_indices = @transform_4, window_bounds = array<i64: 1, 128>}, {pipeline_mode = #tpu.pipeline_mode<synchronous>, transform_indices = @transform_5, window_bounds = array<i64: 1, 128>}, {transform_indices = @transform_6, window_bounds = array<i64: 16, 128>}]} {
    %c0 = arith.constant 0 : index
    %c0_0 = arith.constant 0 : index
    %0 = vector.load %arg1[%c0, %c0_0] : memref<16x1xi32, #tpu.memory_space<vmem>>, vector<16x1xi32>
    %c0_1 = arith.constant 0 : index
    %c0_2 = arith.constant 0 : index
    %1 = vector.load %arg2[%c0_1, %c0_2] : memref<16x1xi32, #tpu.memory_space<vmem>>, vector<16x1xi32>
    %c16_i32 = arith.constant 16 : i32
    %2 = vector.broadcast %c16_i32 : i32 to vector<16x1xi32>
    %3 = arith.addi %1, %2 : vector<16x1xi32>
    %4 = tpu.iota {dimensions = array<i32: 1>} : vector<16x128xi32>
    %5 = vector.broadcast %0 : vector<16x1xi32> to vector<16x128xi32>
    %6 = arith.cmpi eq, %4, %5 : vector<16x128xi32>
    %7 = vector.broadcast %3 : vector<16x1xi32> to vector<16x128xi32>
    %8 = arith.cmpi eq, %4, %7 : vector<16x128xi32>
    %9 = arith.ori %6, %8 : vector<16x128xi1>
    %10 = arith.extui %9 : vector<16x128xi1> to vector<16x128xi32>
    %11 = arith.sitofp %10 : vector<16x128xi32> to vector<16x128xf32>
    %12 = arith.truncf %11 : vector<16x128xf32> to vector<16x128xbf16>
    %c0_3 = arith.constant 0 : index
    %c0_4 = arith.constant 0 : index
    %13 = vector.load %arg3[%c0_3, %c0_4] : memref<128x128xbf16, #tpu.memory_space<vmem>>, vector<128x128xbf16>
    %cst = arith.constant dense<0.000000e+00> : vector<16x128xf32>
    %14 = tpu.matmul %12, %13, %cst {dimension_numbers = #tpu.dot_dimension_numbers<[1], [0], [0], [1], [0, 0, 1, 1], [], []>} : vector<16x128xbf16>, vector<128x128xbf16>, vector<16x128xf32> -> vector<16x128xf32>
    %c0_5 = arith.constant 0 : index
    %c0_6 = arith.constant 0 : index
    %15 = vector.load %arg4[%c0_5, %c0_6] : memref<128x128xbf16, #tpu.memory_space<vmem>>, vector<128x128xbf16>
    %cst_7 = arith.constant dense<0.000000e+00> : vector<16x128xf32>
    %16 = tpu.matmul %12, %15, %cst_7 {dimension_numbers = #tpu.dot_dimension_numbers<[1], [0], [0], [1], [0, 0, 1, 1], [], []>} : vector<16x128xbf16>, vector<128x128xbf16>, vector<16x128xf32> -> vector<16x128xf32>
    %17 = arith.addf %14, %16 : vector<16x128xf32>
    %cst_8 = arith.constant dense<0.000000e+00> : vector<16xf32>
    %18 = vector.multi_reduction <add>, %17, %cst_8 [1] : vector<16x128xf32> to vector<16xf32>
    %19 = vector.shape_cast %18 : vector<16xf32> to vector<16x1xf32>
    %20 = arith.mulf %17, %17 : vector<16x128xf32>
    %cst_9 = arith.constant dense<0.000000e+00> : vector<16xf32>
    %21 = vector.multi_reduction <add>, %20, %cst_9 [1] : vector<16x128xf32> to vector<16xf32>
    %22 = vector.shape_cast %21 : vector<16xf32> to vector<16x1xf32>
    %cst_10 = arith.constant 7.812500e-03 : f32
    %23 = vector.broadcast %cst_10 : f32 to vector<16x1xf32>
    %24 = arith.mulf %19, %23 : vector<16x1xf32>
    %cst_11 = arith.constant 7.812500e-03 : f32
    %25 = vector.broadcast %cst_11 : f32 to vector<16x1xf32>
    %26 = arith.mulf %22, %25 : vector<16x1xf32>
    %27 = arith.mulf %24, %24 : vector<16x1xf32>
    %28 = arith.subf %26, %27 : vector<16x1xf32>
    %cst_12 = arith.constant 0.000000e+00 : f32
    %29 = vector.broadcast %cst_12 : f32 to vector<16x1xf32>
    %30 = arith.maximumf %28, %29 : vector<16x1xf32>
    %31 = vector.broadcast %24 : vector<16x1xf32> to vector<16x128xf32>
    %32 = arith.subf %17, %31 : vector<16x128xf32>
    %cst_13 = arith.constant 9.99999996E-13 : f32
    %33 = vector.broadcast %cst_13 : f32 to vector<16x1xf32>
    %34 = arith.addf %30, %33 : vector<16x1xf32>
    %35 = math.rsqrt %34 : vector<16x1xf32>
    %36 = vector.broadcast %35 : vector<16x1xf32> to vector<16x128xf32>
    %37 = arith.mulf %32, %36 : vector<16x128xf32>
    %c0_14 = arith.constant 0 : index
    %c0_15 = arith.constant 0 : index
    %38 = vector.load %arg5[%c0_14, %c0_15] : memref<1x128xf32, #tpu.memory_space<vmem>>, vector<1x128xf32>
    %c0_16 = arith.constant 0 : index
    %c0_17 = arith.constant 0 : index
    %39 = vector.load %arg6[%c0_16, %c0_17] : memref<1x128xf32, #tpu.memory_space<vmem>>, vector<1x128xf32>
    %40 = vector.broadcast %38 : vector<1x128xf32> to vector<16x128xf32>
    %41 = arith.mulf %37, %40 : vector<16x128xf32>
    %42 = vector.broadcast %39 : vector<1x128xf32> to vector<16x128xf32>
    %43 = arith.addf %41, %42 : vector<16x128xf32>
    %c0_18 = arith.constant 0 : index
    %c0_19 = arith.constant 0 : index
    %44 = vector.load %arg7[%c0_18, %c0_19] : memref<16x128xf32, #tpu.memory_space<vmem>>, vector<16x128xf32>
    tpu.vector_store %arg7[%c0_18, %c0_19], %43 {strides = array<i32>} : memref<16x128xf32, #tpu.memory_space<vmem>>, vector<16x128xf32>,
    return
  }
  func.func @transform_0(%arg0: i32) -> (i32, i32) {
    %c0_i32 = arith.constant 0 : i32
    %c0_i32_0 = arith.constant 0 : i32
    return %arg0, %c0_i32 : i32, i32
  }
  func.func @transform_1(%arg0: i32) -> (i32, i32) {
    %c0_i32 = arith.constant 0 : i32
    %c0_i32_0 = arith.constant 0 : i32
    return %arg0, %c0_i32 : i32, i32
  }
  func.func @transform_2(%arg0: i32) -> (i32, i32) {
    %c0_i32 = arith.constant 0 : i32
    %c0_i32_0 = arith.constant 0 : i32
    %c0_i32_1 = arith.constant 0 : i32
    return %c0_i32, %c0_i32_0 : i32, i32
  }
  func.func @transform_3(%arg0: i32) -> (i32, i32) {
    %c0_i32 = arith.constant 0 : i32
    %c0_i32_0 = arith.constant 0 : i32
    %c0_i32_1 = arith.constant 0 : i32
    return %c0_i32, %c0_i32_0 : i32, i32
  }
  func.func @transform_4(%arg0: i32) -> (i32, i32) {
    %c0_i32 = arith.constant 0 : i32
    %c0_i32_0 = arith.constant 0 : i32
    %c0_i32_1 = arith.constant 0 : i32
    return %c0_i32, %c0_i32_0 : i32, i32
  }
  func.func @transform_5(%arg0: i32) -> (i32, i32) {
    %c0_i32 = arith.constant 0 : i32
    %c0_i32_0 = arith.constant 0 : i32
    %c0_i32_1 = arith.constant 0 : i32
    return %c0_i32, %c0_i32_0 : i32, i32
  }
  func.func @transform_6(%arg0: i32) -> (i32, i32) {
    %c0_i32 = arith.constant 0 : i32
    %c0_i32_0 = arith.constant 0 : i32
    return %arg0, %c0_i32 : i32, i32
  }
}

</mosaic_0001>

<llo_original>
// kernel: tpu_custom_call.1
$region0: #{tpu_custom_call.1}
  #allocation0 [shape = 'u32[]', space=smem, size = 0x4, offset = 0x4, fixed_abs, tag = 'smem constant byte address 0x4 - core index']
  #allocation1 [shape = 'u32[144,128]{1,0:T(1,128)}', space=vmem, size = 0x12000, scoped, tag = 'internal scratch']
  %s0 = inlined_call_operand.vmem [shape: s32[16,1], index: 0, kind: input, shape index: {}]
  %s1 = inlined_call_operand.vmem [shape: s32[16,1], index: 1, kind: input, shape index: {}]
  %s2 = inlined_call_operand.hbm [shape: bf16[128,128], index: 2, kind: input, shape index: {}]
  %s3 = inlined_call_operand.hbm [shape: bf16[128,128], index: 3, kind: input, shape index: {}]
  %s4 = inlined_call_operand.vmem [shape: f32[1,128], index: 4, kind: input, shape index: {}]
  %s5 = inlined_call_operand.vmem [shape: f32[1,128], index: 5, kind: input, shape index: {}]
  %s6 = inlined_call_operand.hbm [shape: f32[16,128], index: 6, kind: output, shape index: {}]
  %s7 = sld [smem:[#allocation0]]
  $region42: #{tpu_custom_call.1} parent=0
    _
  %s9 = ssub.s32 1, %s7
  %s10 = scalar_select 0, %s9, %s7
  $region1: #{tpu_custom_call.1} parent=0
    #allocation2 [shape = 'u8[32768]{0}', space=vmem, size = 0x8000, scoped, tag = 'input window, operand 2, single buffered']
    #allocation3 [shape = 's32[1]{0}', space=sflag, size = 0x4, scoped, tag = 'scoped memory for tpu_custom_call.1']
    #allocation4 [shape = 's32[1]{0}', space=sflag, size = 0x4, scoped, tag = 'scoped memory for tpu_custom_call.1']
    #allocation5 [shape = 'u8[32768]{0}', space=vmem, size = 0x8000, scoped, tag = 'input window, operand 3, single buffered']
    #allocation6 [shape = 's32[1]{0}', space=sflag, size = 0x4, scoped, tag = 'scoped memory for tpu_custom_call.1']
    #allocation7 [shape = 'u8[8192]{0}', space=vmem, size = 0x2000, scoped, tag = 'output window, operand 0, single buffered']
    %11 = vsyncpa [#allocation3], 0
    %12 = vsyncpa [#allocation6], 0
    %13 = vsyncpa [#allocation4], 0
    // Predicated region
    $region2: #{tpu_custom_call.1} parent=1 // pred_check
      _
    $region3: #{tpu_custom_call.1} parent=1 // pred_check_branch
      %15 = sbr.rel (0) target = $region5
    $region4: #{tpu_custom_call.1} parent=1 // pred_region
      _
    $region5: #{tpu_custom_call.1} parent=1 // pred_fallthru
      _
    // Predicated region
    $region6: #{tpu_custom_call.1} parent=1 // pred_check
      _
    $region7: #{tpu_custom_call.1} parent=1 // pred_check_branch
      %17 = sbr.rel (0) target = $region9
    $region8: #{tpu_custom_call.1} parent=1 // pred_region
      _
    $region9: #{tpu_custom_call.1} parent=1 // pred_fallthru
      _
    // Predicated region
    $region10: #{tpu_custom_call.1} parent=1 // pred_check
      _
    $region11: #{tpu_custom_call.1} parent=1 // pred_check_branch
      %19 = sbr.rel (0) target = $region13
    $region12: #{tpu_custom_call.1} parent=1 // pred_region
      %s21 = ssub.s32 1024, 1024
      %22 = vsyncadd [#allocation3], %s21
      %s23 = sshll.u32 [#allocation2], 4
      %s24 = int_to_ptr.vmem [resolvable:$true] %s23
      %29 = dma.hbm_to_vmem [thread:$0]  %s2, 1024, %s24, [#allocation3], 64, 64, 4
    $region13: #{tpu_custom_call.1} parent=1 // pred_fallthru
      _
    // Predicated region
    $region14: #{tpu_custom_call.1} parent=1 // pred_check
      _
    $region15: #{tpu_custom_call.1} parent=1 // pred_check_branch
      %31 = sbr.rel (0) target = $region17
    $region16: #{tpu_custom_call.1} parent=1 // pred_region
      %s33 = ssub.s32 1024, 1024
      %34 = vsyncadd [#allocation6], %s33
      %s35 = sshll.u32 [#allocation5], 4
      %s36 = int_to_ptr.vmem [resolvable:$true] %s35
      %41 = dma.hbm_to_vmem [thread:$0]  %s3, 1024, %s36, [#allocation6], 64, 64, 4
    $region17: #{tpu_custom_call.1} parent=1 // pred_fallthru
      _
    // Predicated region
    $region18: #{tpu_custom_call.1} parent=1 // pred_check
      _
    $region19: #{tpu_custom_call.1} parent=1 // pred_check_branch
      %43 = sbr.rel (0) target = $region21
    $region20: #{tpu_custom_call.1} parent=1 // pred_region
      _
    $region21: #{tpu_custom_call.1} parent=1 // pred_fallthru
      _
    // Predicated region
    $region22: #{tpu_custom_call.1} parent=1 // pred_check
      _
    $region23: #{tpu_custom_call.1} parent=1 // pred_check_branch
      %45 = sbr.rel (0) target = $region25
    $region24: #{tpu_custom_call.1} parent=1 // pred_region
      _
    $region25: #{tpu_custom_call.1} parent=1 // pred_fallthru
      _
    // Predicated region
    $region26: #{tpu_custom_call.1} parent=1 // pred_check
      _
    $region27: #{tpu_custom_call.1} parent=1 // pred_check_branch
      %47 = sbr.rel (0) target = $region29
    $region28: #{tpu_custom_call.1} parent=1 // pred_region
      %48 = dma.done [#allocation3], 1024
    $region29: #{tpu_custom_call.1} parent=1 // pred_fallthru
      _
    // Predicated region
    $region30: #{tpu_custom_call.1} parent=1 // pred_check
      _
    $region31: #{tpu_custom_call.1} parent=1 // pred_check_branch
      %50 = sbr.rel (0) target = $region33
    $region32: #{tpu_custom_call.1} parent=1 // pred_region
      %51 = dma.done [#allocation6], 1024
    $region33: #{tpu_custom_call.1} parent=1 // pred_fallthru
      _
    %v53 = vld [vmem:[%s0] sm:$0xff]
    %v54 = vld [vmem:[%s0 + $0x8] sm:$0xff]
    %v55 = vld [vmem:[%s1] sm:$0xff]
    %v56 = vld [vmem:[%s1 + $0x8] sm:$0xff]
    %v57 = vadd.s32 %v55, 16
    %v58 = vadd.s32 %v56, 16
    %v59 = vlaneseq
    %v60 = vand.u32 %v59, 127
    %61 = vset.pattern.permute.xlu0 0
    %62 = vperm.xlu0 %61, %v53
    %v63 = vpop.permute.xlu0 %62
    %64 = vset.pattern.permute.xlu0 0
    %65 = vperm.xlu0 %64, %v54
    %v66 = vpop.permute.xlu0 %65
    %vm67 = vcmp.eq.s32.totalorder %v60, %v63
    %vm68 = vcmp.eq.s32.totalorder %v60, %v66
    %69 = vset.pattern.permute.xlu0 0
    %70 = vperm.xlu0 %69, %v57
    %v71 = vpop.permute.xlu0 %70
    %72 = vset.pattern.permute.xlu0 0
    %73 = vperm.xlu0 %72, %v58
    %v74 = vpop.permute.xlu0 %73
    %vm75 = vcmp.eq.s32.totalorder %v60, %v71
    %vm76 = vcmp.eq.s32.totalorder %v60, %v74
    %vm77 = vmor %vm67, %vm75
    %vm78 = vmor %vm68, %vm76
    %v79 = vsel %vm77, 1, 0
    %v80 = vsel %vm78, 1, 0
    %v81 = vcvt.s32.f32 %v79
    %v82 = vcvt.s32.f32 %v80
    %v83 = vpack.c.bf16 %v82, %v81
    %v84 = vld [vmem:[#allocation2] sm:$0xf]
    %v85 = vld [vmem:[#allocation2 + $0x4] sm:$0xf]
    %v86 = vld [vmem:[#allocation2 + $0x8] sm:$0xf]
    %v87 = vld [vmem:[#allocation2 + $0xc] sm:$0xf]
    %v88 = vld [vmem:[#allocation2 + $0x10] sm:$0xf]
    %v89 = vld [vmem:[#allocation2 + $0x14] sm:$0xf]
    %v90 = vld [vmem:[#allocation2 + $0x18] sm:$0xf]
    %v91 = vld [vmem:[#allocation2 + $0x1c] sm:$0xf]
    %v92 = vld [vmem:[#allocation2 + $0x20] sm:$0xf]
    %v93 = vld [vmem:[#allocation2 + $0x24] sm:$0xf]
    %v94 = vld [vmem:[#allocation2 + $0x28] sm:$0xf]
    %v95 = vld [vmem:[#allocation2 + $0x2c] sm:$0xf]
    %v96 = vld [vmem:[#allocation2 + $0x30] sm:$0xf]
    %v97 = vld [vmem:[#allocation2 + $0x34] sm:$0xf]
    %v98 = vld [vmem:[#allocation2 + $0x38] sm:$0xf]
    %v99 = vld [vmem:[#allocation2 + $0x3c] sm:$0xf]
    %v100 = vld [vmem:[#allocation5] sm:$0xf]
    %v101 = vld [vmem:[#allocation5 + $0x4] sm:$0xf]
    %v102 = vld [vmem:[#allocation5 + $0x8] sm:$0xf]
    %v103 = vld [vmem:[#allocation5 + $0xc] sm:$0xf]
    %v104 = vld [vmem:[#allocation5 + $0x10] sm:$0xf]
    %v105 = vld [vmem:[#allocation5 + $0x14] sm:$0xf]
    %v106 = vld [vmem:[#allocation5 + $0x18] sm:$0xf]
    %v107 = vld [vmem:[#allocation5 + $0x1c] sm:$0xf]
    %v108 = vld [vmem:[#allocation5 + $0x20] sm:$0xf]
    %v109 = vld [vmem:[#allocation5 + $0x24] sm:$0xf]
    %v110 = vld [vmem:[#allocation5 + $0x28] sm:$0xf]
    %v111 = vld [vmem:[#allocation5 + $0x2c] sm:$0xf]
    %v112 = vld [vmem:[#allocation5 + $0x30] sm:$0xf]
    %v113 = vld [vmem:[#allocation5 + $0x34] sm:$0xf]
    %v114 = vld [vmem:[#allocation5 + $0x38] sm:$0xf]
    %v115 = vld [vmem:[#allocation5 + $0x3c] sm:$0xf]
    %v132 = vunpack.c.l.b16 %v100
    %v133 = vunpack.c.l.b16 %v101
    %v134 = vunpack.c.l.b16 %v102
    %v135 = vunpack.c.l.b16 %v103
    %v136 = vunpack.c.l.b16 %v104
    %v137 = vunpack.c.l.b16 %v105
    %v138 = vunpack.c.l.b16 %v106
    %v139 = vunpack.c.l.b16 %v107
    %v140 = vunpack.c.l.b16 %v108
    %v141 = vunpack.c.l.b16 %v109
    %v142 = vunpack.c.l.b16 %v110
    %v143 = vunpack.c.l.b16 %v111
    %v144 = vunpack.c.l.b16 %v112
    %v145 = vunpack.c.l.b16 %v113
    %v146 = vunpack.c.l.b16 %v114
    %v147 = vunpack.c.l.b16 %v115
    %v148 = vpack.c.b16 %v133, %v132
    %v149 = vpack.c.b16 %v135, %v134
    %v150 = vpack.c.b16 %v137, %v136
    %v151 = vpack.c.b16 %v139, %v138
    %v152 = vpack.c.b16 %v141, %v140
    %v153 = vpack.c.b16 %v143, %v142
    %v154 = vpack.c.b16 %v145, %v144
    %v155 = vpack.c.b16 %v147, %v146
    %164 = vmatprep.subr.bf16.mxu0 0
    %165 = vmatpush1.bf16.msra.mxu0 %v148
    %166 = vmatprep.subr.bf16.mxu0 0
    %167 = vmatpush1.bf16.msra.mxu0 %v149
    %168 = vmatprep.subr.bf16.mxu0 0
    %169 = vmatpush1.bf16.msra.mxu0 %v150
    %170 = vmatprep.subr.bf16.mxu0 0
    %171 = vmatpush1.bf16.msra.mxu0 %v151
    %172 = vmatprep.subr.bf16.mxu0 0
    %173 = vmatpush1.bf16.msra.mxu0 %v152
    %174 = vmatprep.subr.bf16.mxu0 0
    %175 = vmatpush1.bf16.msra.mxu0 %v153
    %176 = vmatprep.subr.bf16.mxu0 0
    %177 = vmatpush1.bf16.msra.mxu0 %v154
    %178 = vmatprep.subr.bf16.mxu0 0
    %179 = vmatpush1.bf16.msra.mxu0 %v155
    %180 = vmatprep.subr.bf16.mxu0 0
    %181 = vmatpush1.bf16.msra.mxu0 0
    %182 = vmatprep.subr.bf16.mxu0 0
    %183 = vmatpush1.bf16.msra.mxu0 0
    %184 = vmatprep.subr.bf16.mxu0 0
    %185 = vmatpush1.bf16.msra.mxu0 0
    %186 = vmatprep.subr.bf16.mxu0 0
    %187 = vmatpush1.bf16.msra.mxu0 0
    %188 = vmatprep.subr.bf16.mxu0 0
    %189 = vmatpush1.bf16.msra.mxu0 0
    %190 = vmatprep.subr.bf16.mxu0 0
    %191 = vmatpush1.bf16.msra.mxu0 0
    %192 = vmatprep.subr.bf16.mxu0 0
    %193 = vmatpush1.bf16.msra.mxu0 0
    %194 = vmatprep.subr.bf16.mxu0 0
    %195 = vmatpush1.bf16.msra.mxu0 0
    %196 = vmatprep.mubr.bf16.mxu0 0
    %197 = vmatmul.mubr.bf16.gmra.mrb[0].mxu0 %v83
    %v198 = vpop.f32.mrb[0].mxu0
    %v199 = vadd.f32 0.0, %v198
    %v200 = vpop.f32.mrb[0].mxu0
    %v201 = vpop.f32.mrb[0].mxu0
    %v202 = vadd.f32 0.0, %v201
    %v203 = vpop.f32.mrb[0].mxu0
    %204 = vdwg.mxu0
    %v221 = vunpack.c.l.b16 %v84
    %v222 = vunpack.c.l.b16 %v85
    %v223 = vunpack.c.l.b16 %v86
    %v224 = vunpack.c.l.b16 %v87
    %v225 = vunpack.c.l.b16 %v88
    %v226 = vunpack.c.l.b16 %v89
    %v227 = vunpack.c.l.b16 %v90
    %v228 = vunpack.c.l.b16 %v91
    %v229 = vunpack.c.l.b16 %v92
    %v230 = vunpack.c.l.b16 %v93
    %v231 = vunpack.c.l.b16 %v94
    %v232 = vunpack.c.l.b16 %v95
    %v233 = vunpack.c.l.b16 %v96
    %v234 = vunpack.c.l.b16 %v97
    %v235 = vunpack.c.l.b16 %v98
    %v236 = vunpack.c.l.b16 %v99
    %v237 = vpack.c.b16 %v222, %v221
    %v238 = vpack.c.b16 %v224, %v223
    %v239 = vpack.c.b16 %v226, %v225
    %v240 = vpack.c.b16 %v228, %v227
    %v241 = vpack.c.b16 %v230, %v229
    %v242 = vpack.c.b16 %v232, %v231
    %v243 = vpack.c.b16 %v234, %v233
    %v244 = vpack.c.b16 %v236, %v235
    %253 = vmatprep.subr.bf16.mxu0 0
    %254 = vmatpush1.bf16.msra.mxu0 %v237
    %255 = vmatprep.subr.bf16.mxu0 0
    %256 = vmatpush1.bf16.msra.mxu0 %v238
    %257 = vmatprep.subr.bf16.mxu0 0
    %258 = vmatpush1.bf16.msra.mxu0 %v239
    %259 = vmatprep.subr.bf16.mxu0 0
    %260 = vmatpush1.bf16.msra.mxu0 %v240
    %261 = vmatprep.subr.bf16.mxu0 0
    %262 = vmatpush1.bf16.msra.mxu0 %v241
    %263 = vmatprep.subr.bf16.mxu0 0
    %264 = vmatpush1.bf16.msra.mxu0 %v242
    %265 = vmatprep.subr.bf16.mxu0 0
    %266 = vmatpush1.bf16.msra.mxu0 %v243
    %267 = vmatprep.subr.bf16.mxu0 0
    %268 = vmatpush1.bf16.msra.mxu0 %v244
    %269 = vmatprep.subr.bf16.mxu0 0
    %270 = vmatpush1.bf16.msra.mxu0 0
    %271 = vmatprep.subr.bf16.mxu0 0
    %272 = vmatpush1.bf16.msra.mxu0 0
    %273 = vmatprep.subr.bf16.mxu0 0
    %274 = vmatpush1.bf16.msra.mxu0 0
    %275 = vmatprep.subr.bf16.mxu0 0
    %276 = vmatpush1.bf16.msra.mxu0 0
    %277 = vmatprep.subr.bf16.mxu0 0
    %278 = vmatpush1.bf16.msra.mxu0 0
    %279 = vmatprep.subr.bf16.mxu0 0
    %280 = vmatpush1.bf16.msra.mxu0 0
    %281 = vmatprep.subr.bf16.mxu0 0
    %282 = vmatpush1.bf16.msra.mxu0 0
    %283 = vmatprep.subr.bf16.mxu0 0
    %284 = vmatpush1.bf16.msra.mxu0 0
    %285 = vmatprep.mubr.bf16.mxu0 0
    %286 = vmatmul.mubr.bf16.gmra.mrb[0].mxu0 %v83
    %v287 = vpop.f32.mrb[0].mxu0
    %v288 = vadd.f32 %v199, %v287
    %v289 = vpop.f32.mrb[0].mxu0
    %v290 = vpop.f32.mrb[0].mxu0
    %v291 = vadd.f32 %v202, %v290
    %v292 = vpop.f32.mrb[0].mxu0
    %293 = vdwg.mxu0
    %294 = vadd.xlane.f32.xlu0 %v288
    %v295 = vpop.xlane.xlu0 %294
    %296 = vadd.xlane.f32.xlu0 %v291
    %v297 = vpop.xlane.xlu0 %296
    %v298 = vmul.f32 %v288, %v288
    %v299 = vmul.f32 %v291, %v291
    %300 = vadd.xlane.f32.xlu0 %v298
    %v301 = vpop.xlane.xlu0 %300
    %302 = vadd.xlane.f32.xlu0 %v299
    %v303 = vpop.xlane.xlu0 %302
    %v304 = vmul.f32 %v295, 0.0078125
    %v305 = vmul.f32 %v297, 0.0078125
    %v306 = vmul.f32 %v301, 0.0078125
    %v307 = vmul.f32 %v303, 0.0078125
    %v308 = vmul.f32 %v304, %v304
    %v309 = vmul.f32 %v305, %v305
    %v310 = vsub.f32 %v306, %v308
    %v311 = vsub.f32 %v307, %v309
    %v312 = vmax.f32 %v310, 0.0
    %v313 = vmax.f32 %v311, 0.0
    %v314 = vsub.f32 %v288, %v304
    %v315 = vsub.f32 %v291, %v305
    %v316 = vadd.f32 %v312, 1e-12
    %v317 = vadd.f32 %v313, 1e-12
    %v318 = vrsqrt.pop %v316
    %v319 = vrsqrt.pop %v317
    %v320 = vmul.f32 %v314, %v318
    %v321 = vmul.f32 %v315, %v319
    %v322 = vld [vmem:[%s4] sm:$0x1]
    %v323 = vld [vmem:[%s5] sm:$0x1]
    %v325 = vlaneseq
    %v326 = vshrl.u32 %v325, 7
    %v327 = vsub.s32 0, %v326
    %v328 = vrot.slane %v322, %v327
    %v330 = vmul.f32 %v320, %v328
    %v331 = vmul.f32 %v321, %v328
    %v333 = vlaneseq
    %v334 = vshrl.u32 %v333, 7
    %v335 = vsub.s32 0, %v334
    %v336 = vrot.slane %v323, %v335
    %v338 = vadd.f32 %v330, %v336
    %v339 = vadd.f32 %v331, %v336
    %340 = vst [vmem:[#allocation7] sm:$0xff] %v338
    %341 = vst [vmem:[#allocation7 + $0x8] sm:$0xff] %v339
    // Predicated region
    $region34: #{tpu_custom_call.1} parent=1 // pred_check
      _
    $region35: #{tpu_custom_call.1} parent=1 // pred_check_branch
      %343 = sbr.rel (0) target = $region37
    $region36: #{tpu_custom_call.1} parent=1 // pred_region
      %s345 = ssub.s32 256, 256
      %346 = vsyncadd [#allocation4], %s345
      %s347 = sshll.u32 [#allocation7], 4
      %s348 = int_to_ptr.vmem [resolvable:$true] %s347
      %353 = dma.vmem_to_hbm [thread:$0]  %s348, 256, %s6, [#allocation4], 128, 128, 8
    $region37: #{tpu_custom_call.1} parent=1 // pred_fallthru
      _
    // Predicated region
    $region38: #{tpu_custom_call.1} parent=1 // pred_check
      _
    $region39: #{tpu_custom_call.1} parent=1 // pred_check_branch
      %355 = sbr.rel (0) target = $region41
    $region40: #{tpu_custom_call.1} parent=1 // pred_region
      %356 = dma.done [#allocation4], 256
    $region41: #{tpu_custom_call.1} parent=1 // pred_fallthru
      _
    %357 = vsyncpa [#allocation3], 1
    %358 = vsyncpa [#allocation6], 1
    %359 = vsyncpa [#allocation4], 1

</llo_original>
